<compile_context>
chip_gen: v6e
topology: v6e:2x2x1
jax: 0.10.0
libtpu: 0.0.40
codegen_flags: <defaults>
</compile_context>

<pallas_src>
import functools

import jax
import jax.numpy as jnp
from jax.experimental import pallas as pl
from jax.experimental.pallas import tpu as pltpu


# --------------------------------------------------------------------------
# Kernels
# --------------------------------------------------------------------------
def _addmult_kernel(x_ref, ewb_ref, o_ref, *, op):
    # x_ref : (R, T)  sublane-dense rows = flattened (batch*channel)
    # ewb_ref: (R, 1) per-row scalar, broadcast along the lane (spatial) dim
    x = x_ref[...]
    e = ewb_ref[...]
    if op == "add":
        o_ref[...] = (x + e).astype(o_ref.dtype)
    else:  # "mult"
        o_ref[...] = (x * e).astype(o_ref.dtype)


def _cat_vpu_kernel(x_ref, wx_ref, ewb_ref, o_ref, *, N):
    # Small-N channel mix on the VPU (MXU would pad N -> 128/256 for ~0 FLOPs).
    # x_ref  : (1, N, T) VMEM, channels-first, lanes = spatial
    # wx_ref : (N, N)    SMEM, weight[:, :N]           (f32 scalars)
    # ewb_ref: (B, N)    SMEM, emb @ We.T + bias       (f32 scalars)
    # o_ref  : (1, N, T) VMEM
    b = pl.program_id(0)
    x = x_ref[0]                                   # (N, T)
    rows = []
    for i in range(N):                             # fully unrolled N*N FMAs
        acc = x[0:1, :] * wx_ref[i, 0]
        for j in range(1, N):
            acc = acc + x[j:j + 1, :] * wx_ref[i, j]
        rows.append(acc + ewb_ref[b, i])
    o_ref[0] = jnp.concatenate(rows, axis=0).astype(o_ref.dtype)


def _cat_mxu_kernel(x_ref, wx_ref, ewb_ref, o_ref):
    # Large-N channel mix on the MXU.
    # x_ref: (1, N, T), wx_ref: (N, N) VMEM (resident), ewb_ref: (1, N, 1) VMEM
    xw = jnp.dot(wx_ref[...], x_ref[0], preferred_element_type=jnp.float32)
    o_ref[0] = (xw + ewb_ref[0]).astype(o_ref.dtype)


# --------------------------------------------------------------------------
# Tile / VMEM sizing helpers
# --------------------------------------------------------------------------
def _vmem_limit_bytes():
    """Generation-aware scoped-VMEM limit (v5e/v6e: 128 MiB phys -> 64 MiB
    scoped; v7x: 64 MiB phys -> 32 MiB scoped)."""
    phys = None
    try:
        phys = getattr(pltpu.get_tpu_info(), "vmem_capacity_bytes", None)
    except Exception:
        phys = None
    if phys is None:
        phys = 64 << 20                       # conservative: v7x per-TC VMEM
    return (64 << 20) if phys >= (128 << 20) else (32 << 20)


def _pick_row_tile(rows):
    # Sublane tile: a multiple of 8 dividing `rows` (capped so tiles stay
    # modest); otherwise the full extent (always a legal block shape).
    if rows % 8 == 0:
        for r in (256, 128, 64, 32, 16, 8):
            if rows % r == 0:
                return r
    return rows


def _pick_lane_tile(KS, rows, itemsize, vmem_limit):
    """Lane tile T: multiple of 128, byte-targeted (~1-4/8 MiB per buffer),
    budget-guarded (double-buffered in + out tiles must fit scoped VMEM)."""
    budget = vmem_limit // 5                  # 2x in + 2x out tiles + slack
    target = min(budget, (4 << 20) if vmem_limit <= (32 << 20) else (8 << 20))
    row_bytes = max(rows, 1) * itemsize
    div128 = [d for d in range(128, KS + 1, 128) if KS % d == 0]
    in_target = [d for d in div128 if row_bytes * d <= target]
    if in_target:
        return in_target[-1]                  # biggest clean tile under target
    in_budget = [d for d in div128 if row_bytes * d <= budget]
    if in_budget:
        return in_budget[-1]
    if row_bytes * KS <= budget:
        return KS                             # small/ragged KS: full extent
    # Last resort: 128-multiple tile + masked tail block (grid uses cdiv).
    t = max(128, (target // row_bytes) // 128 * 128)
    return min(t, max(128, (KS // 128) * 128))


# --------------------------------------------------------------------------
# Wrapper
# --------------------------------------------------------------------------
def fusion_layer(x, emb, weight, bias, fusion_type="cat"):
    """
    x      : [B, N, K, S]
    emb    : [B, D]
    weight : [N, N+D] for 'cat', [N, D] for 'add'/'mult' (torch nn.Linear layout)
    bias   : [N]
    returns: [B, N, K, S]
    """
    assert fusion_type in ("cat", "add", "mult")
    B, N, K, S = x.shape
    KS = K * S
    itemsize = x.dtype.itemsize
    vmem_limit = _vmem_limit_bytes()
    cparams = pltpu.CompilerParams(
        dimension_semantics=("parallel", "parallel"),
        vmem_limit_bytes=vmem_limit,
    )

    if fusion_type == "cat":
        wx = weight[:, :N]                    # (N, N) channel-mix block
        we = weight[:, N:]                    # (N, D) embedding block
    else:
        wx = None
        we = weight                           # (N, D)

    # Hoisted (tiny) embedding projection, bias folded in: (B, N) in f32.
    ewb = (emb.astype(jnp.float32) @ we.astype(jnp.float32).T
           + bias.astype(jnp.float32))

    if fusion_type in ("add", "mult"):
        # Sublane-dense 2D stream: rows = B*N, lanes = spatial.  Free reshapes.
        BN = B * N
        x2 = x.reshape(BN, KS)
        e2 = ewb.reshape(BN, 1).astype(x.dtype)
        R = _pick_row_tile(BN)
        T = _pick_lane_tile(KS, R, itemsize, vmem_limit)
        grid = (pl.cdiv(BN, R), pl.cdiv(KS, T))
        cost = pl.CostEstimate(
            flops=BN * KS,
            transcendentals=0,
            bytes_accessed=(2 * BN * KS + BN) * itemsize,
        )
        out = pl.pallas_call(
            functools.partial(_addmult_kernel, op=fusion_type),
            out_shape=jax.ShapeDtypeStruct((BN, KS), x.dtype),
            grid_spec=pl.GridSpec(
                grid=grid,
                in_specs=[pl.BlockSpec((R, T), lambda r, s: (r, s)),
                          pl.BlockSpec((R, 1), lambda r, s: (r, 0))],
                out_specs=pl.BlockSpec((R, T), lambda r, s: (r, s)),
            ),
            compiler_params=cparams,
            cost_estimate=cost,
            # TODO(synk): set input_output_aliases={0: 0} when x can be donated
            # (saves the extra B*N*K*S HBM allocation); left off because the
            # caller may still hold x.
        )(x2, e2)
        return out.reshape(B, N, K, S)

    # ---- 'cat' ----
    x_cf = x.reshape(B, N, KS)                # free reshape, channels-first
    rows_eff = ((N + 7) // 8) * 8             # VMEM pads sublanes to 8
    T = _pick_lane_tile(KS, rows_eff, itemsize, vmem_limit)
    grid = (B, pl.cdiv(KS, T))
    x_spec = pl.BlockSpec((1, N, T), lambda b, s: (b, 0, s))
    o_spec = pl.BlockSpec((1, N, T), lambda b, s: (b, 0, s))
    cost = pl.CostEstimate(
        flops=2 * B * N * N * KS + B * N * KS,
        transcendentals=0,
        bytes_accessed=2 * B * N * KS * itemsize + (N * N + B * N) * 4,
    )

    if N <= 16:
        # Tiny channel mix: SMEM scalars + unrolled VPU FMA (no MXU padding).
        out = pl.pallas_call(
            functools.partial(_cat_vpu_kernel, N=N),
            out_shape=jax.ShapeDtypeStruct((B, N, KS), x.dtype),
            grid_spec=pl.GridSpec(
                grid=grid,
                in_specs=[x_spec,
                          pl.BlockSpec(memory_space=pltpu.MemorySpace.SMEM),
                          pl.BlockSpec(memory_space=pltpu.MemorySpace.SMEM)],
                out_specs=o_spec,
            ),
            compiler_params=cparams,
            cost_estimate=cost,
        )(x_cf, wx.astype(jnp.float32), ewb)
    else:
        out = pl.pallas_call(
            _cat_mxu_kernel,
            out_shape=jax.ShapeDtypeStruct((B, N, KS), x.dtype),
            grid_spec=pl.GridSpec(
                grid=grid,
                in_specs=[x_spec,
                          pl.BlockSpec((N, N), lambda b, s: (0, 0)),
                          pl.BlockSpec((1, N, 1), lambda b, s: (b, 0, 0))],
                out_specs=o_spec,
            ),
            compiler_params=cparams,
            cost_estimate=cost,
        )(x_cf, wx, ewb.reshape(B, N, 1))
    return out.reshape(B, N, K, S)


# --------------------------------------------------------------------------
# Pure-JAX reference (mirrors the torch forward exactly)
# --------------------------------------------------------------------------
def fusion_layer_ref(x, emb, weight, bias, fusion_type="cat"):
    B, N, K, S = x.shape
    D = emb.shape[1]
    emb_e = jnp.broadcast_to(emb[:, :, None, None], (B, D, K, S))
    if fusion_type == "cat":
        xc = jnp.concatenate([x, emb_e], axis=1)              # [B, N+D, K, S]
        xc = jnp.transpose(xc, (0, 2, 3, 1))                  # [B, K, S, N+D]
        out = xc @ weight.T + bias                            # [B, K, S, N]
        return jnp.transpose(out, (0, 3, 1, 2))               # [B, N, K, S]
    e = jnp.transpose(emb_e, (0, 2, 3, 1))                    # [B, K, S, D]
    out = e @ weight.T + bias                                 # [B, K, S, N]
    out = jnp.transpose(out, (0, 3, 1, 2))                    # [B, N, K, S]
    return x + out if fusion_type == "add" else x * out


# --------------------------------------------------------------------------
# Main
# --------------------------------------------------------------------------
if __name__ == "__main__":
    B, N, K, S, D = 2, 4, 16, 8, 32   # x: [B, N, K, S], emb: [B, D]

    key = jax.random.PRNGKey(0)
    kx, ke, kw1, kb1, kw2, kb2, kx2, kw3, kb3 = jax.random.split(key, 9)

    x = jax.random.normal(kx, (B, N, K, S), dtype=jnp.float32)
    emb = jax.random.normal(ke, (B, D), dtype=jnp.float32)

    # nn.Linear-style deterministic init: U(-1/sqrt(fan_in), 1/sqrt(fan_in))
    fan_cat = N + D
    w_cat = jax.random.uniform(kw1, (N, fan_cat), jnp.float32,
                               -1.0 / jnp.sqrt(fan_cat), 1.0 / jnp.sqrt(fan_cat))
    b_cat = jax.random.uniform(kb1, (N,), jnp.float32,
                               -1.0 / jnp.sqrt(fan_cat), 1.0 / jnp.sqrt(fan_cat))
    w_am = jax.random.uniform(kw2, (N, D), jnp.float32,
                              -1.0 / jnp.sqrt(D), 1.0 / jnp.sqrt(D))
    b_am = jax.random.uniform(kb2, (N,), jnp.float32,
                              -1.0 / jnp.sqrt(D), 1.0 / jnp.sqrt(D))

    # default fusion_type='cat'  (small-N VPU path)
    out_cat = jax.block_until_ready(fusion_layer(x, emb, w_cat, b_cat, "cat"))
    ref_cat = fusion_layer_ref(x, emb, w_cat, b_cat, "cat")
    assert out_cat.shape == (B, N, K, S)
    assert jnp.allclose(out_cat, ref_cat, atol=1e-5, rtol=1e-5)

    # 'add' and 'mult' variants (sublane-dense 2D stream)
    for ft in ("add", "mult"):
        out = jax.block_until_ready(fusion_layer(x, emb, w_am, b_am, ft))
        ref = fusion_layer_ref(x, emb, w_am, b_am, ft)
        assert out.shape == (B, N, K, S)
        assert jnp.allclose(out, ref, atol=1e-5, rtol=1e-5)

    # 'cat' with larger channel count exercises the MXU path (N > 16)
    N2 = 32
    x2 = jax.random.normal(kx2, (B, N2, K, S), dtype=jnp.float32)
    fan2 = N2 + D
    w_cat2 = jax.random.uniform(kw3, (N2, fan2), jnp.float32,
                                -1.0 / jnp.sqrt(fan2), 1.0 / jnp.sqrt(fan2))
    b_cat2 = jax.random.uniform(kb3, (N2,), jnp.float32,
                                -1.0 / jnp.sqrt(fan2), 1.0 / jnp.sqrt(fan2))
    out2 = jax.block_until_ready(fusion_layer(x2, emb, w_cat2, b_cat2, "cat"))
    ref2 = fusion_layer_ref(x2, emb, w_cat2, b_cat2, "cat")
    assert out2.shape == (B, N2, K, S)
    assert jnp.allclose(out2, ref2, atol=1e-4, rtol=1e-4)

    print("KERNEL_OK")
</pallas_src>

<mosaic_0001>
module attributes {stable_mosaic.version = 11 : i64} {
  func.func @_cat_vpu_kernel(%arg0: i32, %arg1: i32, %arg2: memref<1x4x128xf32, #tpu.memory_space<vmem>>, %arg3: memref<4x4xf32, #tpu.memory_space<smem>>, %arg4: memref<2x4xf32, #tpu.memory_space<smem>>, %arg5: memref<1x4x128xf32, #tpu.memory_space<vmem>>) attributes {dimension_semantics = [#tpu.dimension_semantics<parallel>, #tpu.dimension_semantics<parallel>], iteration_bounds = array<i64: 2, 1>, scalar_prefetch = 0 : i64, scratch_operands = 0 : i64, tpu.core_type = #tpu.core_type<tc>, window_params = [{transform_indices = @transform_0, window_bounds = array<i64: 1, 4, 128>}, {transform_indices = @transform_1, window_bounds = array<i64: 4, 4>}, {transform_indices = @transform_2, window_bounds = array<i64: 2, 4>}, {transform_indices = @transform_3, window_bounds = array<i64: 1, 4, 128>}]} {
    %c0 = arith.constant 0 : index
    %c0_0 = arith.constant 0 : index
    %c0_1 = arith.constant 0 : index
    %0 = vector.load %arg2[%c0, %c0_0, %c0_1] : memref<1x4x128xf32, #tpu.memory_space<vmem>>, vector<1x4x128xf32>
    %1 = vector.shape_cast %0 : vector<1x4x128xf32> to vector<4x128xf32>
    %2 = vector.extract_strided_slice %1 {offsets = [0, 0], sizes = [1, 128], strides = [1, 1]} : vector<4x128xf32> to vector<1x128xf32>
    %c0_2 = arith.constant 0 : index
    %c0_3 = arith.constant 0 : index
    %3 = memref.load %arg3[%c0_2, %c0_3] : memref<4x4xf32, #tpu.memory_space<smem>>
    %4 = vector.broadcast %3 : f32 to vector<1x128xf32>
    %5 = arith.mulf %2, %4 : vector<1x128xf32>
    %6 = vector.extract_strided_slice %1 {offsets = [1, 0], sizes = [1, 128], strides = [1, 1]} : vector<4x128xf32> to vector<1x128xf32>
    %c0_4 = arith.constant 0 : index
    %c1 = arith.constant 1 : index
    %7 = memref.load %arg3[%c0_4, %c1] : memref<4x4xf32, #tpu.memory_space<smem>>
    %8 = vector.broadcast %7 : f32 to vector<1x128xf32>
    %9 = arith.mulf %6, %8 : vector<1x128xf32>
    %10 = arith.addf %5, %9 : vector<1x128xf32>
    %11 = vector.extract_strided_slice %1 {offsets = [2, 0], sizes = [1, 128], strides = [1, 1]} : vector<4x128xf32> to vector<1x128xf32>
    %c0_5 = arith.constant 0 : index
    %c2 = arith.constant 2 : index
    %12 = memref.load %arg3[%c0_5, %c2] : memref<4x4xf32, #tpu.memory_space<smem>>
    %13 = vector.broadcast %12 : f32 to vector<1x128xf32>
    %14 = arith.mulf %11, %13 : vector<1x128xf32>
    %15 = arith.addf %10, %14 : vector<1x128xf32>
    %16 = vector.extract_strided_slice %1 {offsets = [3, 0], sizes = [1, 128], strides = [1, 1]} : vector<4x128xf32> to vector<1x128xf32>
    %c0_6 = arith.constant 0 : index
    %c3 = arith.constant 3 : index
    %17 = memref.load %arg3[%c0_6, %c3] : memref<4x4xf32, #tpu.memory_space<smem>>
    %18 = vector.broadcast %17 : f32 to vector<1x128xf32>
    %19 = arith.mulf %16, %18 : vector<1x128xf32>
    %20 = arith.addf %15, %19 : vector<1x128xf32>
    %21 = arith.index_cast %arg0 : i32 to index
    %c0_7 = arith.constant 0 : index
    %22 = memref.load %arg4[%21, %c0_7] : memref<2x4xf32, #tpu.memory_space<smem>>
    %23 = vector.broadcast %22 : f32 to vector<1x128xf32>
    %24 = arith.addf %20, %23 : vector<1x128xf32>
    %25 = vector.extract_strided_slice %1 {offsets = [0, 0], sizes = [1, 128], strides = [1, 1]} : vector<4x128xf32> to vector<1x128xf32>
    %c1_8 = arith.constant 1 : index
    %c0_9 = arith.constant 0 : index
    %26 = memref.load %arg3[%c1_8, %c0_9] : memref<4x4xf32, #tpu.memory_space<smem>>
    %27 = vector.broadcast %26 : f32 to vector<1x128xf32>
    %28 = arith.mulf %25, %27 : vector<1x128xf32>
    %29 = vector.extract_strided_slice %1 {offsets = [1, 0], sizes = [1, 128], strides = [1, 1]} : vector<4x128xf32> to vector<1x128xf32>
    %c1_10 = arith.constant 1 : index
    %c1_11 = arith.constant 1 : index
    %30 = memref.load %arg3[%c1_10, %c1_11] : memref<4x4xf32, #tpu.memory_space<smem>>
    %31 = vector.broadcast %30 : f32 to vector<1x128xf32>
    %32 = arith.mulf %29, %31 : vector<1x128xf32>
    %33 = arith.addf %28, %32 : vector<1x128xf32>
    %34 = vector.extract_strided_slice %1 {offsets = [2, 0], sizes = [1, 128], strides = [1, 1]} : vector<4x128xf32> to vector<1x128xf32>
    %c1_12 = arith.constant 1 : index
    %c2_13 = arith.constant 2 : index
    %35 = memref.load %arg3[%c1_12, %c2_13] : memref<4x4xf32, #tpu.memory_space<smem>>
    %36 = vector.broadcast %35 : f32 to vector<1x128xf32>
    %37 = arith.mulf %34, %36 : vector<1x128xf32>
    %38 = arith.addf %33, %37 : vector<1x128xf32>
    %39 = vector.extract_strided_slice %1 {offsets = [3, 0], sizes = [1, 128], strides = [1, 1]} : vector<4x128xf32> to vector<1x128xf32>
    %c1_14 = arith.constant 1 : index
    %c3_15 = arith.constant 3 : index
    %40 = memref.load %arg3[%c1_14, %c3_15] : memref<4x4xf32, #tpu.memory_space<smem>>
    %41 = vector.broadcast %40 : f32 to vector<1x128xf32>
    %42 = arith.mulf %39, %41 : vector<1x128xf32>
    %43 = arith.addf %38, %42 : vector<1x128xf32>
    %44 = arith.index_cast %arg0 : i32 to index
    %c1_16 = arith.constant 1 : index
    %45 = memref.load %arg4[%44, %c1_16] : memref<2x4xf32, #tpu.memory_space<smem>>
    %46 = vector.broadcast %45 : f32 to vector<1x128xf32>
    %47 = arith.addf %43, %46 : vector<1x128xf32>
    %48 = vector.extract_strided_slice %1 {offsets = [0, 0], sizes = [1, 128], strides = [1, 1]} : vector<4x128xf32> to vector<1x128xf32>
    %c2_17 = arith.constant 2 : index
    %c0_18 = arith.constant 0 : index
    %49 = memref.load %arg3[%c2_17, %c0_18] : memref<4x4xf32, #tpu.memory_space<smem>>
    %50 = vector.broadcast %49 : f32 to vector<1x128xf32>
    %51 = arith.mulf %48, %50 : vector<1x128xf32>
    %52 = vector.extract_strided_slice %1 {offsets = [1, 0], sizes = [1, 128], strides = [1, 1]} : vector<4x128xf32> to vector<1x128xf32>
    %c2_19 = arith.constant 2 : index
    %c1_20 = arith.constant 1 : index
    %53 = memref.load %arg3[%c2_19, %c1_20] : memref<4x4xf32, #tpu.memory_space<smem>>
    %54 = vector.broadcast %53 : f32 to vector<1x128xf32>
    %55 = arith.mulf %52, %54 : vector<1x128xf32>
    %56 = arith.addf %51, %55 : vector<1x128xf32>
    %57 = vector.extract_strided_slice %1 {offsets = [2, 0], sizes = [1, 128], strides = [1, 1]} : vector<4x128xf32> to vector<1x128xf32>
    %c2_21 = arith.constant 2 : index
    %c2_22 = arith.constant 2 : index
    %58 = memref.load %arg3[%c2_21, %c2_22] : memref<4x4xf32, #tpu.memory_space<smem>>
    %59 = vector.broadcast %58 : f32 to vector<1x128xf32>
    %60 = arith.mulf %57, %59 : vector<1x128xf32>
    %61 = arith.addf %56, %60 : vector<1x128xf32>
    %62 = vector.extract_strided_slice %1 {offsets = [3, 0], sizes = [1, 128], strides = [1, 1]} : vector<4x128xf32> to vector<1x128xf32>
    %c2_23 = arith.constant 2 : index
    %c3_24 = arith.constant 3 : index
    %63 = memref.load %arg3[%c2_23, %c3_24] : memref<4x4xf32, #tpu.memory_space<smem>>
    %64 = vector.broadcast %63 : f32 to vector<1x128xf32>
    %65 = arith.mulf %62, %64 : vector<1x128xf32>
    %66 = arith.addf %61, %65 : vector<1x128xf32>
    %67 = arith.index_cast %arg0 : i32 to index
    %c2_25 = arith.constant 2 : index
    %68 = memref.load %arg4[%67, %c2_25] : memref<2x4xf32, #tpu.memory_space<smem>>
    %69 = vector.broadcast %68 : f32 to vector<1x128xf32>
    %70 = arith.addf %66, %69 : vector<1x128xf32>
    %71 = vector.extract_strided_slice %1 {offsets = [0, 0], sizes = [1, 128], strides = [1, 1]} : vector<4x128xf32> to vector<1x128xf32>
    %c3_26 = arith.constant 3 : index
    %c0_27 = arith.constant 0 : index
    %72 = memref.load %arg3[%c3_26, %c0_27] : memref<4x4xf32, #tpu.memory_space<smem>>
    %73 = vector.broadcast %72 : f32 to vector<1x128xf32>
    %74 = arith.mulf %71, %73 : vector<1x128xf32>
    %75 = vector.extract_strided_slice %1 {offsets = [1, 0], sizes = [1, 128], strides = [1, 1]} : vector<4x128xf32> to vector<1x128xf32>
    %c3_28 = arith.constant 3 : index
    %c1_29 = arith.constant 1 : index
    %76 = memref.load %arg3[%c3_28, %c1_29] : memref<4x4xf32, #tpu.memory_space<smem>>
    %77 = vector.broadcast %76 : f32 to vector<1x128xf32>
    %78 = arith.mulf %75, %77 : vector<1x128xf32>
    %79 = arith.addf %74, %78 : vector<1x128xf32>
    %80 = vector.extract_strided_slice %1 {offsets = [2, 0], sizes = [1, 128], strides = [1, 1]} : vector<4x128xf32> to vector<1x128xf32>
    %c3_30 = arith.constant 3 : index
    %c2_31 = arith.constant 2 : index
    %81 = memref.load %arg3[%c3_30, %c2_31] : memref<4x4xf32, #tpu.memory_space<smem>>
    %82 = vector.broadcast %81 : f32 to vector<1x128xf32>
    %83 = arith.mulf %80, %82 : vector<1x128xf32>
    %84 = arith.addf %79, %83 : vector<1x128xf32>
    %85 = vector.extract_strided_slice %1 {offsets = [3, 0], sizes = [1, 128], strides = [1, 1]} : vector<4x128xf32> to vector<1x128xf32>
    %c3_32 = arith.constant 3 : index
    %c3_33 = arith.constant 3 : index
    %86 = memref.load %arg3[%c3_32, %c3_33] : memref<4x4xf32, #tpu.memory_space<smem>>
    %87 = vector.broadcast %86 : f32 to vector<1x128xf32>
    %88 = arith.mulf %85, %87 : vector<1x128xf32>
    %89 = arith.addf %84, %88 : vector<1x128xf32>
    %90 = arith.index_cast %arg0 : i32 to index
    %c3_34 = arith.constant 3 : index
    %91 = memref.load %arg4[%90, %c3_34] : memref<2x4xf32, #tpu.memory_space<smem>>
    %92 = vector.broadcast %91 : f32 to vector<1x128xf32>
    %93 = arith.addf %89, %92 : vector<1x128xf32>
    %94 = tpu.concatenate %24, %47, %70, %93 in 0 : vector<1x128xf32>, vector<1x128xf32>, vector<1x128xf32>, vector<1x128xf32> -> vector<4x128xf32>
    %c0_35 = arith.constant 0 : index
    %c0_36 = arith.constant 0 : index
    %c0_37 = arith.constant 0 : index
    %95 = vector.load %arg5[%c0_35, %c0_36, %c0_37] : memref<1x4x128xf32, #tpu.memory_space<vmem>>, vector<1x4x128xf32>
    %96 = vector.shape_cast %95 : vector<1x4x128xf32> to vector<4x128xf32>
    %97 = vector.shape_cast %94 : vector<4x128xf32> to vector<1x4x128xf32>
    tpu.vector_store %arg5[%c0_35, %c0_36, %c0_37], %97 {strides = array<i32>} : memref<1x4x128xf32, #tpu.memory_space<vmem>>, vector<1x4x128xf32>,
    return
  }
  func.func @transform_0(%arg0: i32, %arg1: i32) -> (i32, i32, i32) {
    %c0_i32 = arith.constant 0 : i32
    %c0_i32_0 = arith.constant 0 : i32
    return %arg0, %c0_i32, %arg1 : i32, i32, i32
  }
  func.func @transform_1(%arg0: i32, %arg1: i32) -> (i32, i32) {
    %c0_i32 = arith.constant 0 : i32
    %c0_i32_0 = arith.constant 0 : i32
    %c0_i32_1 = arith.constant 0 : i32
    return %c0_i32, %c0_i32_0 : i32, i32
  }
  func.func @transform_2(%arg0: i32, %arg1: i32) -> (i32, i32) {
    %c0_i32 = arith.constant 0 : i32
    %c0_i32_0 = arith.constant 0 : i32
    %c0_i32_1 = arith.constant 0 : i32
    return %c0_i32, %c0_i32_0 : i32, i32
  }
  func.func @transform_3(%arg0: i32, %arg1: i32) -> (i32, i32, i32) {
    %c0_i32 = arith.constant 0 : i32
    %c0_i32_0 = arith.constant 0 : i32
    return %arg0, %c0_i32, %arg1 : i32, i32, i32
  }
}

</mosaic_0001>

<llo_original>
// kernel: tpu_custom_call.1
$region0: #{tpu_custom_call.1}
  #allocation0 [shape = 'u32[]', space=smem, size = 0x4, offset = 0x4, fixed_abs, tag = 'smem constant byte address 0x4 - core index']
  #allocation1 [shape = 'u32[144,128]{1,0:T(1,128)}', space=vmem, size = 0x12000, scoped, tag = 'internal scratch']
  %s0 = inlined_call_operand.hbm [shape: f32[2,4,128], index: 0, kind: input, shape index: {}]
  %s1 = inlined_call_operand.hbm [shape: f32[4,4], index: 1, kind: input, shape index: {}]
  %s2 = inlined_call_operand.vmem [shape: f32[2,4], index: 2, kind: input, shape index: {}]
  %s3 = inlined_call_operand.hbm [shape: f32[2,4,128], index: 3, kind: output, shape index: {}]
  %s4 = sld [smem:[#allocation0]]
  $region57: #{tpu_custom_call.1} parent=0
    _
  %s6 = ssub.s32 1, %s4
  %s7 = scalar_select 0, %s6, %s4
  $region1: #{tpu_custom_call.1} parent=0
    #allocation2 [shape = 'u8[4096]{0}', space=vmem, size = 0x1000, scoped, tag = 'input window, operand 0']
    #allocation3 [shape = 's32[2]{0}', space=sflag, size = 0x8, scoped, tag = 'scoped memory for tpu_custom_call.1']
    #allocation4 [shape = 's32[2]{0}', space=sflag, size = 0x8, scoped, tag = 'scoped memory for tpu_custom_call.1']
    #allocation5 [shape = 's32[2]{0}', space=sflag, size = 0x8, scoped, tag = 'scoped memory for tpu_custom_call.1']
    #allocation6 [shape = 's32[2]{0}', space=sflag, size = 0x8, scoped, tag = 'scoped memory for tpu_custom_call.1']
    #allocation7 [shape = 'u8[2048]{0}', space=smem, size = 0x800, scoped, tag = 'input window, operand 1, single buffered']
    #allocation8 [shape = 'u8[1024]{0}', space=smem, size = 0x400, scoped, tag = 'input window, operand 2, single buffered']
    #allocation9 [shape = 'u8[4096]{0}', space=vmem, size = 0x1000, scoped, tag = 'output window, operand 0']
    %8 = vsyncpa [#allocation3], 0
    %s9 = scalar_lea.sflag [#allocation3], 1
    %10 = vsyncpa %s9, 0
    %11 = vsyncpa [#allocation5], 0
    %12 = vsyncpa [#allocation6], 0
    %13 = vsyncpa [#allocation4], 0
    %s14 = scalar_lea.sflag [#allocation4], 1
    %15 = vsyncpa %s14, 0
    loop: start=0, step=1, limit=4
    $region2: #{tpu_custom_call.1} parent=1 // loop_pre_header
      _
    $region3: #{tpu_custom_call.1} parent=1 // loop_header
      %s17 = sphi 0, %s21
      %p18 = scmp.ge.s32.totalorder %s17, 4
      %s24 = sphi 0, %s36
      %s25 = sphi 0, %s32
      %s26 = sphi 0, %s24
      %s27 = sphi 0, %s25
      %s28 = sphi 0, %s26
      %s29 = sphi 0, %s27
      %s41 = sphi 0, %s43
      %s44 = sphi 0, %s41
      %s45 = sphi 0, %s44
      %s61 = sphi 0, %s45
      %s65 = sphi 0, %s65
      %s67 = sphi 0, %s65
      %s68 = sphi 0, %s67
      %s82 = sphi 0, %s68
      %s86 = sphi 0, %s86
      %s88 = sphi 0, %s86
      %s89 = sphi 0, %s88
      %s103 = sphi 0, %s89
      %s111 = sphi 0, %s113
      %s114 = sphi 0, %s111
      %s115 = sphi 0, %s114
      %s131 = sphi 0, %s115
    $region4: #{tpu_custom_call.1} parent=1 // loop_header_branch
      %20 = sbr.rel (%p18) target = $region8
    $region5: #{tpu_custom_call.1} parent=1 // loop_body
      %s22 = ssub.s32 %s17, 1
      %s23 = ssub.s32 %s17, 2
      %s30 = sadd.s32 1, %s25
      %p31 = scmp.ge.s32.totalorder %s30, 1
      %s32 = scalar_select %p31, 0, %s30
      %s33 = sadd.s32 1, %s24
      %s34 = scalar_select %p31, %s33, %s24
      %p35 = scmp.ge.s32.totalorder %s34, 2
      %s36 = scalar_select %p35, 0, %s34
      %s37 = ssub.s32 %s24, %s36
      %s38 = ssub.s32 %s25, %s32
      %s39 = sor.u32 %s37, %s38
      %p40 = scmp.eq.s32.totalorder %s39, 0
      %s42 = sadd.s32 %s41, 1
      %s43 = scalar_select %p40, %s41, %s42
      %p46 = pneg %p40
      %p47 = scmp.eq.s32.totalorder %s17, 1
      %p48 = por %p46, %p47
      %p49 = scmp.ne.s32.totalorder %s41, %s44
      %p50 = scmp.eq.s32.totalorder %s17, 0
      %p51 = por %p49, %p50
      %p52 = scmp.ne.s32.totalorder %s41, %s44
      %p53 = scmp.eq.s32.totalorder %s22, 1
      %p54 = por %p52, %p53
      %p55 = scmp.ne.s32.totalorder %s44, %s45
      %p56 = scmp.eq.s32.totalorder %s22, 0
      %p57 = por %p55, %p56
      %p58 = scmp.ne.s32.totalorder %s44, %s45
      %p59 = scmp.eq.s32.totalorder %s23, 1
      %p60 = por %p58, %p59
      %p62 = scmp.ne.s32.totalorder %s45, %s61
      %p63 = scmp.eq.s32.totalorder %s23, 0
      %p64 = por %p62, %p63
      %s66 = sadd.s32 %s65, 1
      %p69 = scmp.eq.s32.totalorder %s17, 1
      %p70 = scmp.ne.s32.totalorder %s65, %s67
      %p71 = scmp.eq.s32.totalorder %s17, 0
      %p72 = por %p70, %p71
      %p73 = scmp.ne.s32.totalorder %s65, %s67
      %p74 = scmp.eq.s32.totalorder %s22, 1
      %p75 = por %p73, %p74
      %p76 = scmp.ne.s32.totalorder %s67, %s68
      %p77 = scmp.eq.s32.totalorder %s22, 0
      %p78 = por %p76, %p77
      %p79 = scmp.ne.s32.totalorder %s67, %s68
      %p80 = scmp.eq.s32.totalorder %s23, 1
      %p81 = por %p79, %p80
      %p83 = scmp.ne.s32.totalorder %s68, %s82
      %p84 = scmp.eq.s32.totalorder %s23, 0
      %p85 = por %p83, %p84
      %s87 = sadd.s32 %s86, 1
      %p90 = scmp.eq.s32.totalorder %s17, 1
      %p91 = scmp.ne.s32.totalorder %s86, %s88
      %p92 = scmp.eq.s32.totalorder %s17, 0
      %p93 = por %p91, %p92
      %p94 = scmp.ne.s32.totalorder %s86, %s88
      %p95 = scmp.eq.s32.totalorder %s22, 1
      %p96 = por %p94, %p95
      %p97 = scmp.ne.s32.totalorder %s88, %s89
      %p98 = scmp.eq.s32.totalorder %s22, 0
      %p99 = por %p97, %p98
      %p100 = scmp.ne.s32.totalorder %s88, %s89
      %p101 = scmp.eq.s32.totalorder %s23, 1
      %p102 = por %p100, %p101
      %p104 = scmp.ne.s32.totalorder %s89, %s103
      %p105 = scmp.eq.s32.totalorder %s23, 0
      %p106 = por %p104, %p105
      %s107 = ssub.s32 %s24, %s36
      %s108 = ssub.s32 %s25, %s32
      %s109 = sor.u32 %s107, %s108
      %p110 = scmp.eq.s32.totalorder %s109, 0
      %s112 = sadd.s32 %s111, 1
      %s113 = scalar_select %p110, %s111, %s112
      %p116 = pneg %p110
      %p117 = scmp.eq.s32.totalorder %s17, 1
      %p118 = por %p116, %p117
      %p119 = scmp.ne.s32.totalorder %s111, %s114
      %p120 = scmp.eq.s32.totalorder %s17, 0
      %p121 = por %p119, %p120
      %p122 = scmp.ne.s32.totalorder %s111, %s114
      %p123 = scmp.eq.s32.totalorder %s22, 1
      %p124 = por %p122, %p123
      %p125 = scmp.ne.s32.totalorder %s114, %s115
      %p126 = scmp.eq.s32.totalorder %s22, 0
      %p127 = por %p125, %p126
      %p128 = scmp.ne.s32.totalorder %s114, %s115
      %p129 = scmp.eq.s32.totalorder %s23, 1
      %p130 = por %p128, %p129
      %p132 = scmp.ne.s32.totalorder %s115, %s131
      %p133 = scmp.eq.s32.totalorder %s23, 0
      %p134 = por %p132, %p133
      %p135 = scmp.le.s32.totalorder 1, %s17
      %p136 = scmp.lt.s32.totalorder %s17, 3
      %p137 = pnand %p135, %p136
      %p138 = pneg %p137
      // Predicated region
      $region9: #{tpu_custom_call.1} parent=5 // pred_check
        _
      $region10: #{tpu_custom_call.1} parent=5 // pred_check_branch
        %140 = sbr.rel (%p137) target = $region12
      $region11: #{tpu_custom_call.1} parent=5 // pred_region
        %s141 = ssub.s32 %s17, 1
        // Predicated region
        $region13: #{tpu_custom_call.1} parent=11 // pred_check
          %p142 = pneg %p78
        $region14: #{tpu_custom_call.1} parent=11 // pred_check_branch
          %144 = sbr.rel (%p142) target = $region16
        $region15: #{tpu_custom_call.1} parent=11 // pred_region
          %s146 = ssub.s32 64, 64
          %147 = vsyncadd [#allocation5], %s146
          %150 = dma.hbm_to_smem %s1, 64, [#allocation7], [#allocation5]
        $region16: #{tpu_custom_call.1} parent=11 // pred_fallthru
          _
        // Predicated region
        $region17: #{tpu_custom_call.1} parent=11 // pred_check
          %p151 = pneg %p99
        $region18: #{tpu_custom_call.1} parent=11 // pred_check_branch
          %153 = sbr.rel (%p151) target = $region20
        $region19: #{tpu_custom_call.1} parent=11 // pred_region
          %s155 = ssub.s32 32, 32
          %156 = vsyncadd [#allocation6], %s155
          %s158 = sshll.u32 %s2, 4
          %s159 = int_to_ptr.vmem [resolvable:$true] %s158
          %161 = dma.vmem_to_smem %s159, 32, [#allocation8], [#allocation6]
        $region20: #{tpu_custom_call.1} parent=11 // pred_fallthru
          _
      $region12: #{tpu_custom_call.1} parent=5 // pred_fallthru
        _
      %p162 = scmp.lt.s32.totalorder %s17, 2
      // Predicated region
      $region21: #{tpu_custom_call.1} parent=5 // pred_check
        %p163 = pneg %p162
      $region22: #{tpu_custom_call.1} parent=5 // pred_check_branch
        %165 = sbr.rel (%p163) target = $region24
      $region23: #{tpu_custom_call.1} parent=5 // pred_region
        // Predicated region
        $region25: #{tpu_custom_call.1} parent=23 // pred_check
          %p166 = pneg %p51
        $region26: #{tpu_custom_call.1} parent=23 // pred_check_branch
          %168 = sbr.rel (%p166) target = $region28
        $region27: #{tpu_custom_call.1} parent=23 // pred_region
          %s169 = sand.u32 %s41, 1
          %s170 = scalar_lea.sflag [#allocation3], %s169
          %s171 = sand.u32 %s41, 1
          %s172 = smul.addr %s171, 4
          %s173 = scalar_lea.vmem [#allocation2], %s172
          %s175 = ssub.s32 64, 64
          %176 = vsyncadd %s170, %s175
          %s177 = sadd.s32 %s25, %s24
          %s178 = smul.addr %s177, 64
          %s179 = scalar_lea.hbm %s0, %s178
          %s181 = sshll.u32 %s173, 4
          %s182 = int_to_ptr.vmem [resolvable:$true] %s181
          %184 = dma.hbm_to_vmem [thread:$0]  %s179, 64, %s182, %s170
        $region28: #{tpu_custom_call.1} parent=23 // pred_fallthru
          _
      $region24: #{tpu_custom_call.1} parent=5 // pred_fallthru
        _
      %p185 = scmp.le.s32.totalorder 1, %s17
      %p186 = scmp.lt.s32.totalorder %s17, 3
      %p187 = pnand %p185, %p186
      %p188 = pneg %p187
      // Predicated region
      $region29: #{tpu_custom_call.1} parent=5 // pred_check
        _
      $region30: #{tpu_custom_call.1} parent=5 // pred_check_branch
        %190 = sbr.rel (%p187) target = $region32
      $region31: #{tpu_custom_call.1} parent=5 // pred_region
        %s191 = ssub.s32 %s17, 1
        %s192 = sand.u32 %s44, 1
        %s193 = scalar_lea.sflag [#allocation3], %s192
        %s194 = sand.u32 %s44, 1
        %s195 = smul.addr %s194, 4
        %s196 = scalar_lea.vmem [#allocation2], %s195
        // Predicated region
        $region33: #{tpu_custom_call.1} parent=31 // pred_check
          %p197 = pneg %p57
        $region34: #{tpu_custom_call.1} parent=31 // pred_check_branch
          %199 = sbr.rel (%p197) target = $region36
        $region35: #{tpu_custom_call.1} parent=31 // pred_region
          %200 = dma.done %s193, 64
        $region36: #{tpu_custom_call.1} parent=31 // pred_fallthru
          _
        // Predicated region
        $region37: #{tpu_custom_call.1} parent=31 // pred_check
          %p201 = pneg %p78
        $region38: #{tpu_custom_call.1} parent=31 // pred_check_branch
          %203 = sbr.rel (%p201) target = $region40
        $region39: #{tpu_custom_call.1} parent=31 // pred_region
          %204 = dma.done [#allocation5], 64
        $region40: #{tpu_custom_call.1} parent=31 // pred_fallthru
          _
        // Predicated region
        $region41: #{tpu_custom_call.1} parent=31 // pred_check
          %p205 = pneg %p99
        $region42: #{tpu_custom_call.1} parent=31 // pred_check_branch
          %207 = sbr.rel (%p205) target = $region44
        $region43: #{tpu_custom_call.1} parent=31 // pred_region
          %208 = dma.done [#allocation6], 32
        $region44: #{tpu_custom_call.1} parent=31 // pred_fallthru
          _
        %209 = sfence
        %s210 = sand.u32 %s44, 1
        %s211 = scalar_lea.sflag [#allocation3], %s210
        %s212 = sand.u32 %s44, 1
        %s213 = smul.addr %s212, 4
        %s214 = scalar_lea.vmem [#allocation2], %s213
        %p215 = pneg %p57
        %p216 = pneg %p54
        %p217 = pneg %p78
        %p218 = pneg %p75
        %p219 = pneg %p99
        %p220 = pneg %p96
        %p221 = pneg %p127
        %p222 = pneg %p124
        %s223 = sand.u32 %s114, 1
        %s224 = scalar_lea.sflag [#allocation4], %s223
        %s225 = sand.u32 %s114, 1
        %s226 = smul.addr %s225, 4
        %s227 = scalar_lea.vmem [#allocation9], %s226
        %v228 = vld [vmem:[%s196] sm:$0xf]
        %s229 = sld [smem:[#allocation7]]
        %v230 = vstv %s229
        %v231 = vmul.f32 %v228, %v230
        %s232 = sld [smem:[#allocation7 + $0x1]]
        %v233 = vstv %s232
        %v234 = vmul.f32 %v228, %v233
        %v236 = vrot.slane %v234, 1
        %v238 = vadd.f32 %v231, %v236
        %s239 = sld [smem:[#allocation7 + $0x2]]
        %v240 = vstv %s239
        %v241 = vmul.f32 %v228, %v240
        %v243 = vrot.slane %v241, 2
        %v245 = vadd.f32 %v238, %v243
        %s246 = sld [smem:[#allocation7 + $0x3]]
        %v247 = vstv %s246
        %v248 = vmul.f32 %v228, %v247
        %v250 = vrot.slane %v248, 3
        %v252 = vadd.f32 %v245, %v250
        %s253 = smul.u32 %s26, 128
        %s254 = sld [smem:[#allocation8 + %s253]]
        %v255 = vstv %s254
        %v256 = vadd.f32 %v252, %v255
        %s257 = sld [smem:[#allocation7 + $0x80]]
        %v258 = vstv %s257
        %v259 = vmul.f32 %v228, %v258
        %s260 = sld [smem:[#allocation7 + $0x81]]
        %v261 = vstv %s260
        %v262 = vmul.f32 %v228, %v261
        %v264 = vrot.slane %v262, 1
        %v266 = vadd.f32 %v259, %v264
        %s267 = sld [smem:[#allocation7 + $0x82]]
        %v268 = vstv %s267
        %v269 = vmul.f32 %v228, %v268
        %v271 = vrot.slane %v269, 2
        %v273 = vadd.f32 %v266, %v271
        %s274 = sld [smem:[#allocation7 + $0x83]]
        %v275 = vstv %s274
        %v276 = vmul.f32 %v228, %v275
        %v278 = vrot.slane %v276, 3
        %v280 = vadd.f32 %v273, %v278
        %s281 = sadd.s32 %s253, 1
        %s282 = sld [smem:[#allocation8 + %s281]]
        %v283 = vstv %s282
        %v284 = vadd.f32 %v280, %v283
        %s285 = sld [smem:[#allocation7 + $0x100]]
        %v286 = vstv %s285
        %v287 = vmul.f32 %v228, %v286
        %s288 = sld [smem:[#allocation7 + $0x101]]
        %v289 = vstv %s288
        %v290 = vmul.f32 %v228, %v289
        %v292 = vrot.slane %v290, 1
        %v294 = vadd.f32 %v287, %v292
        %s295 = sld [smem:[#allocation7 + $0x102]]
        %v296 = vstv %s295
        %v297 = vmul.f32 %v228, %v296
        %v299 = vrot.slane %v297, 2
        %v301 = vadd.f32 %v294, %v299
        %s302 = sld [smem:[#allocation7 + $0x103]]
        %v303 = vstv %s302
        %v304 = vmul.f32 %v228, %v303
        %v306 = vrot.slane %v304, 3
        %v308 = vadd.f32 %v301, %v306
        %s309 = sadd.s32 %s253, 2
        %s310 = sld [smem:[#allocation8 + %s309]]
        %v311 = vstv %s310
        %v312 = vadd.f32 %v308, %v311
        %s313 = sld [smem:[#allocation7 + $0x180]]
        %v314 = vstv %s313
        %v315 = vmul.f32 %v228, %v314
        %s316 = sld [smem:[#allocation7 + $0x181]]
        %v317 = vstv %s316
        %v318 = vmul.f32 %v228, %v317
        %v320 = vrot.slane %v318, 1
        %v322 = vadd.f32 %v315, %v320
        %s323 = sld [smem:[#allocation7 + $0x182]]
        %v324 = vstv %s323
        %v325 = vmul.f32 %v228, %v324
        %v327 = vrot.slane %v325, 2
        %v329 = vadd.f32 %v322, %v327
        %s330 = sld [smem:[#allocation7 + $0x183]]
        %v331 = vstv %s330
        %v332 = vmul.f32 %v228, %v331
        %v334 = vrot.slane %v332, 3
        %v336 = vadd.f32 %v329, %v334
        %s337 = sadd.s32 %s253, 3
        %s338 = sld [smem:[#allocation8 + %s337]]
        %v339 = vstv %s338
        %v340 = vadd.f32 %v336, %v339
        %v342 = vrot.slane %v284, 7
        %v345 = vrot.slane %v312, 6
        %v348 = vrot.slane %v340, 5
        %vm350 = vcmask 1040384
        %v351 = vsel %vm350, %v256, %v342
        %vm352 = vcmask 1041408
        %v353 = vsel %vm352, %v351, %v345
        %vm354 = vcmask 1042432
        %v355 = vsel %vm354, %v353, %v348
        %356 = vst [vmem:[%s227] sm:$0xf] %v355
        %s357 = sand.u32 %s114, 1
        %s358 = scalar_lea.sflag [#allocation4], %s357
        %s359 = sand.u32 %s114, 1
        %s360 = smul.addr %s359, 4
        %s361 = scalar_lea.vmem [#allocation9], %s360
        // Predicated region
        $region45: #{tpu_custom_call.1} parent=31 // pred_check
          %p362 = pneg %p124
        $region46: #{tpu_custom_call.1} parent=31 // pred_check_branch
          %364 = sbr.rel (%p362) target = $region48
        $region47: #{tpu_custom_call.1} parent=31 // pred_region
          %s366 = ssub.s32 64, 64
          %367 = vsyncadd %s358, %s366
          %s368 = sadd.s32 %s27, %s26
          %s369 = smul.addr %s368, 64
          %s370 = scalar_lea.hbm %s3, %s369
          %s372 = sshll.u32 %s361, 4
          %s373 = int_to_ptr.vmem [resolvable:$true] %s372
          %375 = dma.vmem_to_hbm [thread:$0]  %s373, 64, %s370, %s358
        $region48: #{tpu_custom_call.1} parent=31 // pred_fallthru
          _
      $region32: #{tpu_custom_call.1} parent=5 // pred_fallthru
        _
      %p376 = scmp.le.s32.totalorder 2, %s17
      // Predicated region
      $region49: #{tpu_custom_call.1} parent=5 // pred_check
        %p377 = pneg %p376
      $region50: #{tpu_custom_call.1} parent=5 // pred_check_branch
        %379 = sbr.rel (%p377) target = $region52
      $region51: #{tpu_custom_call.1} parent=5 // pred_region
        %s380 = ssub.s32 %s17, 2
        // Predicated region
        $region53: #{tpu_custom_call.1} parent=51 // pred_check
          %p381 = pneg %p130
        $region54: #{tpu_custom_call.1} parent=51 // pred_check_branch
          %383 = sbr.rel (%p381) target = $region56
        $region55: #{tpu_custom_call.1} parent=51 // pred_region
          %s384 = sand.u32 %s115, 1
          %s385 = scalar_lea.sflag [#allocation4], %s384
          %s386 = sand.u32 %s115, 1
          %s387 = smul.addr %s386, 4
          %s388 = scalar_lea.vmem [#allocation9], %s387
          %389 = dma.done %s385, 64
        $region56: #{tpu_custom_call.1} parent=51 // pred_fallthru
          _
      $region52: #{tpu_custom_call.1} parent=5 // pred_fallthru
        _
    $region6: #{tpu_custom_call.1} parent=1 // loop_footer
      %s21 = sadd.s32 1, %s17
    $region7: #{tpu_custom_call.1} parent=1 // loop_footer_branch
      %16 = sbr.rel target = $region3
    $region8: #{tpu_custom_call.1} parent=1 // loop_exit
      _
    %390 = vsyncpa [#allocation3], 1
    %s391 = scalar_lea.sflag [#allocation3], 1
    %392 = vsyncpa %s391, 1
    %393 = vsyncpa [#allocation4], 1
    %s394 = scalar_lea.sflag [#allocation4], 1
    %395 = vsyncpa %s394, 1
    %396 = vsyncpa [#allocation5], 1
    %s397 = scalar_lea.sflag [#allocation5], 1
    %398 = vsyncpa %s397, 1
    %399 = vsyncpa [#allocation6], 1
    %s400 = scalar_lea.sflag [#allocation6], 1
    %401 = vsyncpa %s400, 1

</llo_original>
